<compile_context>
chip_gen: v7x
topology: tpu7x:2x2x1
jax: 0.10.0
libtpu: 0.0.40
codegen_flags: <defaults>
</compile_context>

<pallas_src>
import numpy as np
import jax
import jax.numpy as jnp
from jax.experimental import pallas as pl
from jax.experimental.pallas import tpu as pltpu

ALPHA = 0.5
GAMMA = 1.5
BETA = 1.0
LOSS_WEIGHT = 1.0
VAR_XY = 0.1   # variances = [0.1, 0.1, 0.2, 0.2]
VAR_WH = 0.2
_B = float(np.e ** (GAMMA / ALPHA) - 1.0)


def _balanced_l1(diff):
    """Elementwise balanced-L1 on a [2, TILE] slab (f32)."""
    small = (ALPHA / _B) * (_B * diff + 1.0) * jnp.log(_B * diff / BETA + 1.0) \
        - ALPHA * diff
    big = GAMMA * diff + (GAMMA / _B - ALPHA * BETA)
    return jnp.where(diff < BETA, small, big)


def _balanced_l1_kernel(pred_ref, target_ref, anchor_ref, out_ref):
    # Input refs: [4, TILE] -- components on sublanes, boxes on lanes.
    prd = pred_ref[...].astype(jnp.float32)
    tgt = target_ref[...].astype(jnp.float32)
    anc = anchor_ref[...].astype(jnp.float32)

    a_lo = anc[0:2, :]                 # (x1, y1)  -> [2, TILE]
    a_hi = anc[2:4, :]                 # (x2, y2)
    t_lo = tgt[0:2, :]
    t_hi = tgt[2:4, :]

    a_size = a_hi - a_lo               # (aw, ah)
    inv_a = 1.0 / a_size               # computed once, reused twice
    a_ctr = (a_lo + a_hi) * 0.5

    # encode(target, anchor, variances=[0.1, 0.1, 0.2, 0.2])
    g_xy = ((t_lo + t_hi) * 0.5 - a_ctr) * inv_a * (1.0 / VAR_XY)
    g_wh = jnp.log((t_hi - t_lo) * inv_a) * (1.0 / VAR_WH)

    loss_xy = _balanced_l1(jnp.abs(prd[0:2, :] - g_xy))
    loss_wh = _balanced_l1(jnp.abs(prd[2:4, :] - g_wh))

    partial = jnp.sum(loss_xy + loss_wh)
    # Lane-dense per-tile partial; the wrapper reads [:, 0, 0].
    out_ref[...] = jnp.full(out_ref.shape, partial, dtype=out_ref.dtype)


def _round_up(x, m):
    return (x + m - 1) // m * m


def balanced_l1_loss(pred, target, anchor, reduction="mean", max_tile=8192):
    """weight=None, avg_factor=None path of BalancedL1Loss.forward."""
    # TODO(synk): per-element `weight`, `avg_factor` and reduction='none'
    # paths are not wired through the kernel (module defaults only).
    assert pred.shape == target.shape == anchor.shape
    n, c = pred.shape
    assert c == 4

    # Lane-dense layout: [4, N].  Keep the original dtype (cast in-kernel).
    pred_t = jnp.transpose(pred)
    tgt_t = jnp.transpose(target)
    anc_t = jnp.transpose(anchor)

    tile = min(_round_up(max_tile, 128), _round_up(n, 128))
    n_pad = _round_up(n, tile)
    num_tiles = n_pad // tile

    if n_pad != n:
        # Safe padding that contributes exactly 0 loss:
        # pred = 0, target = anchor = (0, 0, 1, 1)  ->  gt = 0, diff = 0.
        def pad(x_t, col):
            fill = jnp.broadcast_to(
                jnp.asarray(col, dtype=x_t.dtype)[:, None], (4, n_pad - n))
            return jnp.concatenate([x_t, fill], axis=1)

        pred_t = pad(pred_t, (0.0, 0.0, 0.0, 0.0))
        tgt_t = pad(tgt_t, (0.0, 0.0, 1.0, 1.0))
        anc_t = pad(anc_t, (0.0, 0.0, 1.0, 1.0))

    in_spec = pl.BlockSpec((4, tile), lambda i: (0, i))
    out_spec = pl.BlockSpec((1, 8, 128), lambda i: (i, 0, 0))

    cost = pl.CostEstimate(
        flops=40 * 4 * n_pad,
        transcendentals=8 * n_pad,                       # 2 log + 2 rcp + 4 log
        bytes_accessed=3 * 4 * n_pad * pred_t.dtype.itemsize
        + num_tiles * 8 * 128 * 4,
    )

    partials = pl.pallas_call(
        _balanced_l1_kernel,
        out_shape=jax.ShapeDtypeStruct((num_tiles, 8, 128), jnp.float32),
        grid=(num_tiles,),
        in_specs=[in_spec, in_spec, in_spec],
        out_specs=out_spec,
        compiler_params=pltpu.CompilerParams(
            dimension_semantics=("parallel",),           # megacore-shardable
            vmem_limit_bytes=32 * 1024 * 1024,           # safe on v7x's 64 MiB
        ),
        cost_estimate=cost,
    )(pred_t, tgt_t, anc_t)

    total = jnp.sum(partials[:, 0, 0])
    if reduction == "mean":
        red = total / (n * c)          # true element count, not padded
    elif reduction == "sum":
        red = total
    else:
        raise ValueError("only 'mean'/'sum' supported in the kernel path")
    return LOSS_WEIGHT * red


def _reference(pred, target, anchor):
    pred = pred.astype(jnp.float32)
    target = target.astype(jnp.float32)
    anchor = anchor.astype(jnp.float32)
    ax1, ay1, ax2, ay2 = [anchor[:, i:i + 1] for i in range(4)]
    acx, acy = (ax1 + ax2) / 2, (ay1 + ay2) / 2
    aw, ah = ax2 - ax1, ay2 - ay1
    tx1, ty1, tx2, ty2 = [target[:, i:i + 1] for i in range(4)]
    g_cx = ((tx1 + tx2) / 2 - acx) / (VAR_XY * aw)
    g_cy = ((ty1 + ty2) / 2 - acy) / (VAR_XY * ah)
    g_w = jnp.log((tx2 - tx1) / aw) / VAR_WH
    g_h = jnp.log((ty2 - ty1) / ah) / VAR_WH
    gt = jnp.concatenate([g_cx, g_cy, g_w, g_h], axis=1)
    diff = jnp.abs(pred - gt)
    b = np.e ** (GAMMA / ALPHA) - 1.0
    loss = jnp.where(
        diff < BETA,
        ALPHA / b * (b * diff + 1.0) * jnp.log(b * diff / BETA + 1.0) - ALPHA * diff,
        GAMMA * diff + GAMMA / b - ALPHA * BETA,
    )
    return LOSS_WEIGHT * jnp.mean(loss)


if __name__ == "__main__":
    key = jax.random.PRNGKey(0)
    k1, k2, k3, k4, k5 = jax.random.split(key, 5)
    N = 64  # N_max

    # pred: regression deltas (dx, dy, dw, dh)
    pred = jax.random.normal(k1, (N, 4), dtype=jnp.float32) * 0.1

    # valid boxes (x1 < x2, y1 < y2) for target and anchor
    def make_boxes(ka, kb):
        xy1 = jax.random.uniform(ka, (N, 2), minval=0.0, maxval=50.0)
        wh = jax.random.uniform(kb, (N, 2), minval=4.0, maxval=30.0)
        return jnp.concatenate([xy1, xy1 + wh], axis=1).astype(jnp.float32)

    target = make_boxes(k2, k3)
    anchor = make_boxes(k4, k5)

    out = balanced_l1_loss(pred, target, anchor)
    out = jax.block_until_ready(out)

    ref = _reference(pred, target, anchor)
    assert jnp.allclose(out, ref, rtol=1e-4, atol=1e-5), (out, ref)
    print("KERNEL_OK")
</pallas_src>

<mosaic_0001>
module attributes {stable_mosaic.version = 11 : i64} {
  func.func @_balanced_l1_kernel(%arg0: i32, %arg1: memref<4x128xf32, #tpu.memory_space<vmem>>, %arg2: memref<4x128xf32, #tpu.memory_space<vmem>>, %arg3: memref<4x128xf32, #tpu.memory_space<vmem>>, %arg4: memref<1x8x128xf32, #tpu.memory_space<vmem>>) attributes {dimension_semantics = [#tpu.dimension_semantics<parallel>], iteration_bounds = array<i64: 1>, scalar_prefetch = 0 : i64, scratch_operands = 0 : i64, tpu.core_type = #tpu.core_type<tc>, window_params = [{transform_indices = @transform_0, window_bounds = array<i64: 4, 128>}, {transform_indices = @transform_1, window_bounds = array<i64: 4, 128>}, {transform_indices = @transform_2, window_bounds = array<i64: 4, 128>}, {transform_indices = @transform_3, window_bounds = array<i64: 1, 8, 128>}]} {
    %c0 = arith.constant 0 : index
    %c0_0 = arith.constant 0 : index
    %0 = vector.load %arg1[%c0, %c0_0] : memref<4x128xf32, #tpu.memory_space<vmem>>, vector<4x128xf32>
    %c0_1 = arith.constant 0 : index
    %c0_2 = arith.constant 0 : index
    %1 = vector.load %arg2[%c0_1, %c0_2] : memref<4x128xf32, #tpu.memory_space<vmem>>, vector<4x128xf32>
    %c0_3 = arith.constant 0 : index
    %c0_4 = arith.constant 0 : index
    %2 = vector.load %arg3[%c0_3, %c0_4] : memref<4x128xf32, #tpu.memory_space<vmem>>, vector<4x128xf32>
    %3 = vector.extract_strided_slice %2 {offsets = [0, 0], sizes = [2, 128], strides = [1, 1]} : vector<4x128xf32> to vector<2x128xf32>
    %4 = vector.extract_strided_slice %2 {offsets = [2, 0], sizes = [2, 128], strides = [1, 1]} : vector<4x128xf32> to vector<2x128xf32>
    %5 = vector.extract_strided_slice %1 {offsets = [0, 0], sizes = [2, 128], strides = [1, 1]} : vector<4x128xf32> to vector<2x128xf32>
    %6 = vector.extract_strided_slice %1 {offsets = [2, 0], sizes = [2, 128], strides = [1, 1]} : vector<4x128xf32> to vector<2x128xf32>
    %7 = arith.subf %4, %3 : vector<2x128xf32>
    %cst = arith.constant 1.000000e+00 : f32
    %8 = vector.broadcast %cst : f32 to vector<2x128xf32>
    %9 = arith.divf %8, %7 : vector<2x128xf32>
    %10 = arith.addf %3, %4 : vector<2x128xf32>
    %cst_5 = arith.constant 5.000000e-01 : f32
    %11 = vector.broadcast %cst_5 : f32 to vector<2x128xf32>
    %12 = arith.mulf %10, %11 : vector<2x128xf32>
    %13 = arith.addf %5, %6 : vector<2x128xf32>
    %cst_6 = arith.constant 5.000000e-01 : f32
    %14 = vector.broadcast %cst_6 : f32 to vector<2x128xf32>
    %15 = arith.mulf %13, %14 : vector<2x128xf32>
    %16 = arith.subf %15, %12 : vector<2x128xf32>
    %17 = arith.mulf %16, %9 : vector<2x128xf32>
    %cst_7 = arith.constant 1.000000e+01 : f32
    %18 = vector.broadcast %cst_7 : f32 to vector<2x128xf32>
    %19 = arith.mulf %17, %18 : vector<2x128xf32>
    %20 = arith.subf %6, %5 : vector<2x128xf32>
    %21 = arith.mulf %20, %9 : vector<2x128xf32>
    %22 = math.log %21 : vector<2x128xf32>
    %cst_8 = arith.constant 5.000000e+00 : f32
    %23 = vector.broadcast %cst_8 : f32 to vector<2x128xf32>
    %24 = arith.mulf %22, %23 : vector<2x128xf32>
    %25 = vector.extract_strided_slice %0 {offsets = [0, 0], sizes = [2, 128], strides = [1, 1]} : vector<4x128xf32> to vector<2x128xf32>
    %26 = arith.subf %25, %19 : vector<2x128xf32>
    %27 = math.absf %26 : vector<2x128xf32>
    %cst_9 = arith.constant 19.085537 : f32
    %28 = vector.broadcast %cst_9 : f32 to vector<2x128xf32>
    %29 = arith.mulf %28, %27 : vector<2x128xf32>
    %cst_10 = arith.constant 1.000000e+00 : f32
    %30 = vector.broadcast %cst_10 : f32 to vector<2x128xf32>
    %31 = arith.addf %29, %30 : vector<2x128xf32>
    %cst_11 = arith.constant 0.0261978488 : f32
    %32 = vector.broadcast %cst_11 : f32 to vector<2x128xf32>
    %33 = arith.mulf %32, %31 : vector<2x128xf32>
    %cst_12 = arith.constant 19.085537 : f32
    %34 = vector.broadcast %cst_12 : f32 to vector<2x128xf32>
    %35 = arith.mulf %34, %27 : vector<2x128xf32>
    %cst_13 = arith.constant 1.000000e+00 : f32
    %36 = vector.broadcast %cst_13 : f32 to vector<2x128xf32>
    %37 = arith.divf %35, %36 : vector<2x128xf32>
    %cst_14 = arith.constant 1.000000e+00 : f32
    %38 = vector.broadcast %cst_14 : f32 to vector<2x128xf32>
    %39 = arith.addf %37, %38 : vector<2x128xf32>
    %40 = math.log %39 : vector<2x128xf32>
    %41 = arith.mulf %33, %40 : vector<2x128xf32>
    %cst_15 = arith.constant 5.000000e-01 : f32
    %42 = vector.broadcast %cst_15 : f32 to vector<2x128xf32>
    %43 = arith.mulf %42, %27 : vector<2x128xf32>
    %44 = arith.subf %41, %43 : vector<2x128xf32>
    %cst_16 = arith.constant 1.500000e+00 : f32
    %45 = vector.broadcast %cst_16 : f32 to vector<2x128xf32>
    %46 = arith.mulf %45, %27 : vector<2x128xf32>
    %cst_17 = arith.constant -0.421406448 : f32
    %47 = vector.broadcast %cst_17 : f32 to vector<2x128xf32>
    %48 = arith.addf %46, %47 : vector<2x128xf32>
    %cst_18 = arith.constant 1.000000e+00 : f32
    %49 = vector.broadcast %cst_18 : f32 to vector<2x128xf32>
    %50 = arith.cmpf olt, %27, %49 : vector<2x128xf32>
    %51 = arith.select %50, %44, %48 : vector<2x128xi1>, vector<2x128xf32>
    %52 = vector.extract_strided_slice %0 {offsets = [2, 0], sizes = [2, 128], strides = [1, 1]} : vector<4x128xf32> to vector<2x128xf32>
    %53 = arith.subf %52, %24 : vector<2x128xf32>
    %54 = math.absf %53 : vector<2x128xf32>
    %cst_19 = arith.constant 19.085537 : f32
    %55 = vector.broadcast %cst_19 : f32 to vector<2x128xf32>
    %56 = arith.mulf %55, %54 : vector<2x128xf32>
    %cst_20 = arith.constant 1.000000e+00 : f32
    %57 = vector.broadcast %cst_20 : f32 to vector<2x128xf32>
    %58 = arith.addf %56, %57 : vector<2x128xf32>
    %cst_21 = arith.constant 0.0261978488 : f32
    %59 = vector.broadcast %cst_21 : f32 to vector<2x128xf32>
    %60 = arith.mulf %59, %58 : vector<2x128xf32>
    %cst_22 = arith.constant 19.085537 : f32
    %61 = vector.broadcast %cst_22 : f32 to vector<2x128xf32>
    %62 = arith.mulf %61, %54 : vector<2x128xf32>
    %cst_23 = arith.constant 1.000000e+00 : f32
    %63 = vector.broadcast %cst_23 : f32 to vector<2x128xf32>
    %64 = arith.divf %62, %63 : vector<2x128xf32>
    %cst_24 = arith.constant 1.000000e+00 : f32
    %65 = vector.broadcast %cst_24 : f32 to vector<2x128xf32>
    %66 = arith.addf %64, %65 : vector<2x128xf32>
    %67 = math.log %66 : vector<2x128xf32>
    %68 = arith.mulf %60, %67 : vector<2x128xf32>
    %cst_25 = arith.constant 5.000000e-01 : f32
    %69 = vector.broadcast %cst_25 : f32 to vector<2x128xf32>
    %70 = arith.mulf %69, %54 : vector<2x128xf32>
    %71 = arith.subf %68, %70 : vector<2x128xf32>
    %cst_26 = arith.constant 1.500000e+00 : f32
    %72 = vector.broadcast %cst_26 : f32 to vector<2x128xf32>
    %73 = arith.mulf %72, %54 : vector<2x128xf32>
    %cst_27 = arith.constant -0.421406448 : f32
    %74 = vector.broadcast %cst_27 : f32 to vector<2x128xf32>
    %75 = arith.addf %73, %74 : vector<2x128xf32>
    %cst_28 = arith.constant 1.000000e+00 : f32
    %76 = vector.broadcast %cst_28 : f32 to vector<2x128xf32>
    %77 = arith.cmpf olt, %54, %76 : vector<2x128xf32>
    %78 = arith.select %77, %71, %75 : vector<2x128xi1>, vector<2x128xf32>
    %79 = arith.addf %51, %78 : vector<2x128xf32>
    %80 = vector.shape_cast %79 : vector<2x128xf32> to vector<1x2x128xf32>
    %cst_29 = arith.constant dense<0.000000e+00> : vector<1xf32>
    %81 = vector.multi_reduction <add>, %80, %cst_29 [1, 2] : vector<1x2x128xf32> to vector<1xf32>
    %82 = vector.shape_cast %81 : vector<1xf32> to vector<1x1x1xf32>
    %83 = vector.extract %82[0, 0, 0] : f32 from vector<1x1x1xf32>
    %84 = vector.broadcast %83 : f32 to vector<1x8x128xf32>
    %c0_30 = arith.constant 0 : index
    %c0_31 = arith.constant 0 : index
    %c0_32 = arith.constant 0 : index
    %85 = vector.load %arg4[%c0_30, %c0_31, %c0_32] : memref<1x8x128xf32, #tpu.memory_space<vmem>>, vector<1x8x128xf32>
    tpu.vector_store %arg4[%c0_30, %c0_31, %c0_32], %84 {strides = array<i32>} : memref<1x8x128xf32, #tpu.memory_space<vmem>>, vector<1x8x128xf32>,
    return
  }
  func.func @transform_0(%arg0: i32) -> (i32, i32) {
    %c0_i32 = arith.constant 0 : i32
    %c0_i32_0 = arith.constant 0 : i32
    return %c0_i32, %arg0 : i32, i32
  }
  func.func @transform_1(%arg0: i32) -> (i32, i32) {
    %c0_i32 = arith.constant 0 : i32
    %c0_i32_0 = arith.constant 0 : i32
    return %c0_i32, %arg0 : i32, i32
  }
  func.func @transform_2(%arg0: i32) -> (i32, i32) {
    %c0_i32 = arith.constant 0 : i32
    %c0_i32_0 = arith.constant 0 : i32
    return %c0_i32, %arg0 : i32, i32
  }
  func.func @transform_3(%arg0: i32) -> (i32, i32, i32) {
    %c0_i32 = arith.constant 0 : i32
    %c0_i32_0 = arith.constant 0 : i32
    %c0_i32_1 = arith.constant 0 : i32
    return %arg0, %c0_i32, %c0_i32_0 : i32, i32, i32
  }
}

</mosaic_0001>

<llo_original>
// kernel: tpu_custom_call.1
$region0: #{tpu_custom_call.1}
  #allocation0 [shape = 'u32[]', space=smem, size = 0x4, offset = 0x4, fixed_abs, tag = 'smem constant byte address 0x4 - core index']
  #allocation1 [shape = 'u32[144,128]{1,0:T(1,128)}', space=vmem, size = 0x12000, scoped, tag = 'internal scratch']
  %s0 = inlined_call_operand.hbm [shape: f32[4,128], index: 0, kind: input, shape index: {}]
  %s1 = inlined_call_operand.hbm [shape: f32[4,128], index: 1, kind: input, shape index: {}]
  %s2 = inlined_call_operand.vmem [shape: f32[4,128], index: 2, kind: input, shape index: {}]
  %s3 = inlined_call_operand.hbm [shape: f32[1,8,128], index: 3, kind: output, shape index: {}]
  %s4 = sld [smem:[#allocation0]]
  $region30: #{tpu_custom_call.1} parent=0
    _
  %s6 = ssub.s32 1, %s4
  %s7 = scalar_select 0, %s6, %s4
  $region1: #{tpu_custom_call.1} parent=0
    #allocation2 [shape = 'u8[2048]{0}', space=vmem, size = 0x800, scoped, tag = 'input window, operand 0, single buffered']
    #allocation3 [shape = 's32[1]{0}', space=sflag, size = 0x4, scoped, tag = 'scoped memory for tpu_custom_call.1']
    #allocation4 [shape = 's32[1]{0}', space=sflag, size = 0x4, scoped, tag = 'scoped memory for tpu_custom_call.1']
    #allocation5 [shape = 'u8[2048]{0}', space=vmem, size = 0x800, scoped, tag = 'input window, operand 1, single buffered']
    #allocation6 [shape = 's32[1]{0}', space=sflag, size = 0x4, scoped, tag = 'scoped memory for tpu_custom_call.1']
    #allocation7 [shape = 'u8[4096]{0}', space=vmem, size = 0x1000, scoped, tag = 'output window, operand 0, single buffered']
    %8 = vsyncpa [#allocation3], 0
    %9 = vsyncpa [#allocation6], 0
    %10 = vsyncpa [#allocation4], 0
    // Predicated region
    $region2: #{tpu_custom_call.1} parent=1 // pred_check
      _
    $region3: #{tpu_custom_call.1} parent=1 // pred_check_branch
      %12 = sbr.rel (0) target = $region5
    $region4: #{tpu_custom_call.1} parent=1 // pred_region
      %s14 = ssub.s32 64, 64
      %15 = vsyncadd [#allocation3], %s14
      %s17 = sshll.u32 [#allocation2], 4
      %s18 = int_to_ptr.vmem [resolvable:$true] %s17
      %20 = dma.hbm_to_vmem [thread:$0]  %s0, 64, %s18, [#allocation3]
    $region5: #{tpu_custom_call.1} parent=1 // pred_fallthru
      _
    // Predicated region
    $region6: #{tpu_custom_call.1} parent=1 // pred_check
      _
    $region7: #{tpu_custom_call.1} parent=1 // pred_check_branch
      %22 = sbr.rel (0) target = $region9
    $region8: #{tpu_custom_call.1} parent=1 // pred_region
      %s24 = ssub.s32 64, 64
      %25 = vsyncadd [#allocation6], %s24
      %s27 = sshll.u32 [#allocation5], 4
      %s28 = int_to_ptr.vmem [resolvable:$true] %s27
      %30 = dma.hbm_to_vmem [thread:$0]  %s1, 64, %s28, [#allocation6]
    $region9: #{tpu_custom_call.1} parent=1 // pred_fallthru
      _
    // Predicated region
    $region10: #{tpu_custom_call.1} parent=1 // pred_check
      _
    $region11: #{tpu_custom_call.1} parent=1 // pred_check_branch
      %32 = sbr.rel (0) target = $region13
    $region12: #{tpu_custom_call.1} parent=1 // pred_region
      _
    $region13: #{tpu_custom_call.1} parent=1 // pred_fallthru
      _
    // Predicated region
    $region14: #{tpu_custom_call.1} parent=1 // pred_check
      _
    $region15: #{tpu_custom_call.1} parent=1 // pred_check_branch
      %34 = sbr.rel (0) target = $region17
    $region16: #{tpu_custom_call.1} parent=1 // pred_region
      %35 = dma.done [#allocation3], 64
    $region17: #{tpu_custom_call.1} parent=1 // pred_fallthru
      _
    // Predicated region
    $region18: #{tpu_custom_call.1} parent=1 // pred_check
      _
    $region19: #{tpu_custom_call.1} parent=1 // pred_check_branch
      %37 = sbr.rel (0) target = $region21
    $region20: #{tpu_custom_call.1} parent=1 // pred_region
      %38 = dma.done [#allocation6], 64
    $region21: #{tpu_custom_call.1} parent=1 // pred_fallthru
      _
    %v39 = vld [vmem:[#allocation2] sm:$0xf]
    %v40 = vld [vmem:[#allocation5] sm:$0xf]
    %v41 = vld [vmem:[%s2] sm:$0xf]
    %v43 = vrot.slane %v41, 6
    %v45 = vsub.f32 %v41, %v43
    %v46 = vrcp.pop %v45
    %v47 = vmul.f32 1.0, %v46
    %v48 = vrot.slane %v41, 2
    %v50 = vadd.f32 %v41, %v48
    %v51 = vmul.f32 %v50, 0.5
    %v53 = vrot.slane %v40, 2
    %v55 = vadd.f32 %v40, %v53
    %v56 = vmul.f32 %v55, 0.5
    %v57 = vsub.f32 %v56, %v51
    %v59 = vrot.slane %v47, 2
    %v61 = vmul.f32 %v57, %v59
    %v62 = vmul.f32 %v61, 10.0
    %v63 = vrot.slane %v40, 6
    %v65 = vsub.f32 %v40, %v63
    %v66 = vmul.f32 %v65, %v47
    %v67 = vlog2.pop %v66
    %v68 = vmul.f32 %v67, 0.6931472
    %v69 = vmul.f32 %v68, 5.0
    %v70 = vsub.f32 %v39, %v62
    %v71 = vand.u32 2147483647, %v70
    %v72 = vmul.f32 %v71, 19.085537
    %v73 = vadd.f32 %v72, 1.0
    %v74 = vmul.f32 %v73, 0.026197849
    %v75 = vlog2.pop %v73
    %v76 = vmul.f32 %v75, 0.6931472
    %v77 = vmul.f32 %v74, %v76
    %v78 = vmul.f32 %v71, 0.5
    %v79 = vsub.f32 %v77, %v78
    %v80 = vmul.f32 %v71, 1.5
    %v81 = vadd.f32 %v80, -0.42140645
    %vm82 = vcmp.lt.f32.partialorder %v71, 1.0
    %v83 = vsel %vm82, %v79, %v81
    %v84 = vsub.f32 %v39, %v69
    %v85 = vand.u32 2147483647, %v84
    %v86 = vmul.f32 %v85, 19.085537
    %v87 = vadd.f32 %v86, 1.0
    %v88 = vmul.f32 %v87, 0.026197849
    %v89 = vlog2.pop %v87
    %v90 = vmul.f32 %v89, 0.6931472
    %v91 = vmul.f32 %v88, %v90
    %v92 = vmul.f32 %v85, 0.5
    %v93 = vsub.f32 %v91, %v92
    %v94 = vmul.f32 %v85, 1.5
    %v95 = vadd.f32 %v94, -0.42140645
    %vm96 = vcmp.lt.f32.partialorder %v85, 1.0
    %v97 = vsel %vm96, %v93, %v95
    %v99 = vrot.slane %v97, 2
    %v101 = vadd.f32 %v83, %v99
    %vm102 = vcmask 1041408
    %v103 = vsel %vm102, %v101, 0.0
    %104 = vadd.xlane.f32.xlu0 %v103
    %v105 = vpop.xlane.xlu0 %104
    %v106 = vrot.slane %v105, 4
    %v107 = vadd.f32 %v105, %v106
    %v108 = vrot.slane %v107, 2
    %v109 = vadd.f32 %v107, %v108
    %v110 = vrot.slane %v109, 1
    %v111 = vadd.f32 %v109, %v110
    %s112 = vtos %v111
    %v113 = vstv %s112
    %114 = vst [vmem:[#allocation7] sm:$0xff] %v113
    // Predicated region
    $region22: #{tpu_custom_call.1} parent=1 // pred_check
      _
    $region23: #{tpu_custom_call.1} parent=1 // pred_check_branch
      %116 = sbr.rel (0) target = $region25
    $region24: #{tpu_custom_call.1} parent=1 // pred_region
      %s118 = ssub.s32 128, 128
      %119 = vsyncadd [#allocation4], %s118
      %s121 = sshll.u32 [#allocation7], 4
      %s122 = int_to_ptr.vmem [resolvable:$true] %s121
      %124 = dma.vmem_to_hbm [thread:$0]  %s122, 128, %s3, [#allocation4]
    $region25: #{tpu_custom_call.1} parent=1 // pred_fallthru
      _
    // Predicated region
    $region26: #{tpu_custom_call.1} parent=1 // pred_check
      _
    $region27: #{tpu_custom_call.1} parent=1 // pred_check_branch
      %126 = sbr.rel (0) target = $region29
    $region28: #{tpu_custom_call.1} parent=1 // pred_region
      %127 = dma.done [#allocation4], 128
    $region29: #{tpu_custom_call.1} parent=1 // pred_fallthru
      _
    %128 = vsyncpa [#allocation3], 1
    %129 = vsyncpa [#allocation6], 1
    %130 = vsyncpa [#allocation4], 1

</llo_original>
